<compile_context>
chip_gen: v6e
topology: v6e:2x2x1
jax: 0.10.0
libtpu: 0.0.40
codegen_flags: <defaults>
</compile_context>

<pallas_src>
import functools

import jax
import jax.numpy as jnp
import numpy as np
from jax.experimental import pallas as pl
from jax.experimental.pallas import tpu as pltpu


# ----------------------------- Pallas kernel ------------------------------ #
def _b3dqn_kernel(x_ref, w1c_ref, b1c_ref, w2bd_ref, b2c_ref, w3_ref, b3_ref,
                  mu_out_ref, un_out_ref, *, n_sample, h_dim, a_pad):
    x = x_ref[...]                                                    # (Bp, s_dim)

    # Layer 1 fused across samples (weights concatenated along the output dim):
    # one MXU push -> (Bp, n_sample*h_dim).
    h1 = jnp.dot(x, w1c_ref[...], preferred_element_type=jnp.float32)
    h1 = jnp.maximum(h1 + b1c_ref[...], 0.0)                          # ReLU

    # Layer 2 fused across samples via a block-diagonal weight: a single
    # (Bp, n*h) x (n*h, n*h) matmul replaces n_sample tiny matmuls and removes
    # all within-lane slicing of h1 / per-sample bias slicing.
    h2 = jnp.dot(h1, w2bd_ref[...], preferred_element_type=jnp.float32)
    h2 = jnp.maximum(h2 + b2c_ref[...], 0.0)                          # ReLU

    b3_all = b3_ref[...]                                              # (n, 2*a_pad)

    mus = []
    sum_sv = jnp.zeros(mu_out_ref.shape, jnp.float32)

    # Static (unrolled) per-sample output head: n_sample is a trace-time constant.
    for i in range(n_sample):
        h2_i = h2[:, i * h_dim:(i + 1) * h_dim]                       # (Bp, h)
        o = jnp.dot(h2_i, w3_ref[i], preferred_element_type=jnp.float32)
        o = o + b3_all[i:i + 1, :]                                    # (Bp, 2*a_pad)

        mu_i = o[:, :a_pad]                                           # (Bp, a_pad)
        var_i = jax.nn.softplus(o[:, a_pad:])                         # (Bp, a_pad)

        mus.append(mu_i)
        sum_sv = sum_sv + jnp.sqrt(var_i)

    nf = jnp.float32(n_sample)
    mean = sum(mus) / nf

    # Unbiased sample std over the draws (torch.std default, two-pass form).
    # Note: torch yields NaN for n_sample == 1; we guard the divisor (-> 0 std).
    denom = jnp.float32(max(n_sample - 1, 1))
    var_model = sum((m - mean) * (m - mean) for m in mus) / denom

    mu_out_ref[...] = mean
    un_out_ref[...] = jnp.sqrt(var_model) + sum_sv / nf


def _block_diag(ws):
    """ws: (n, r, c) -> block-diagonal (n*r, n*c)."""
    n, r, c = ws.shape
    out = jnp.zeros((n * r, n * c), ws.dtype)
    for i in range(n):
        out = out.at[i * r:(i + 1) * r, i * c:(i + 1) * c].set(ws[i])
    return out


def b3dqn_forward(x, w1, b1, w2, b2, w3, b3):
    """x: (B, s_dim); w*/b* carry a leading n_sample axis of sampled weights."""
    B, s_dim = x.shape
    n_sample, _, h_dim = w1.shape
    a_dim = w3.shape[2] // 2
    nh = n_sample * h_dim

    # Lane-/sublane-dense padded sizes for the kernel outputs.
    Bp = int(pl.cdiv(B, 8)) * 8
    Ap = int(pl.cdiv(max(a_dim, 1), 128)) * 128

    # Pad batch with zero rows (sliced off afterwards).
    xp = jnp.zeros((Bp, s_dim), jnp.float32).at[:B, :].set(x.astype(jnp.float32))

    # Layer-1 fusion: concatenate the n_sample weight draws along the output dim.
    w1cat = jnp.transpose(w1, (1, 0, 2)).reshape(s_dim, nh)
    b1cat = b1.reshape(1, nh)

    # Layer-2 fusion: block-diagonal weight so each sample's activations only
    # see that sample's draw.
    w2bd = _block_diag(w2)                       # (nh, nh)
    b2cat = b2.reshape(1, nh)

    # Zero-pad the output head so mu lives in cols [0, Ap) and var in [Ap, 2*Ap):
    # lane-tile-aligned slices in the kernel and unmasked (8,128) output stores.
    w3p = jnp.zeros((n_sample, h_dim, 2 * Ap), jnp.float32)
    w3p = w3p.at[:, :, :a_dim].set(w3[:, :, :a_dim])
    w3p = w3p.at[:, :, Ap:Ap + a_dim].set(w3[:, :, a_dim:])
    b3p = jnp.zeros((n_sample, 2 * Ap), jnp.float32)
    b3p = b3p.at[:, :a_dim].set(b3[:, :a_dim])
    b3p = b3p.at[:, Ap:Ap + a_dim].set(b3[:, a_dim:])

    kernel = functools.partial(
        _b3dqn_kernel, n_sample=n_sample, h_dim=h_dim, a_pad=Ap)

    flops = 2 * Bp * (s_dim * nh + nh * nh + n_sample * h_dim * 2 * Ap)
    in_bytes = 4 * (Bp * s_dim + s_dim * nh + nh + nh * nh + nh
                    + n_sample * h_dim * 2 * Ap + n_sample * 2 * Ap)
    out_bytes = 4 * 2 * Bp * Ap
    cost = pl.CostEstimate(flops=flops,
                           transcendentals=n_sample * Bp * Ap,
                           bytes_accessed=in_bytes + out_bytes)

    grid_spec = pltpu.PrefetchScalarGridSpec(
        num_scalar_prefetch=0,
        grid=(1,),
        in_specs=[
            pl.BlockSpec((Bp, s_dim), lambda i: (0, 0)),
            pl.BlockSpec((s_dim, nh), lambda i: (0, 0)),
            pl.BlockSpec((1, nh), lambda i: (0, 0)),
            pl.BlockSpec((nh, nh), lambda i: (0, 0)),
            pl.BlockSpec((1, nh), lambda i: (0, 0)),
            pl.BlockSpec((n_sample, h_dim, 2 * Ap), lambda i: (0, 0, 0)),
            pl.BlockSpec((n_sample, 2 * Ap), lambda i: (0, 0)),
        ],
        out_specs=[
            pl.BlockSpec((Bp, Ap), lambda i: (0, 0)),
            pl.BlockSpec((Bp, Ap), lambda i: (0, 0)),
        ],
    )

    mu_p, un_p = pl.pallas_call(
        kernel,
        out_shape=(jax.ShapeDtypeStruct((Bp, Ap), jnp.float32),
                   jax.ShapeDtypeStruct((Bp, Ap), jnp.float32)),
        grid_spec=grid_spec,
        compiler_params=pltpu.CompilerParams(dimension_semantics=("arbitrary",)),
        cost_estimate=cost,
    )(xp, w1cat, b1cat, w2bd, b2cat, w3p, b3p)

    return mu_p[:B, :a_dim], un_p[:B, :a_dim]


# ------------------------- parameter setup (glue) -------------------------- #
def init_bayes_linear(key, in_dim, out_dim):
    kmu, kb = jax.random.split(key)
    w_mu = 0.1 * jax.random.normal(kmu, (in_dim, out_dim), jnp.float32)
    w_rho = jnp.full((in_dim, out_dim), -3.0, jnp.float32)
    b_mu = 0.1 * jax.random.normal(kb, (out_dim,), jnp.float32)
    b_rho = jnp.full((out_dim,), -3.0, jnp.float32)
    return (w_mu, w_rho, b_mu, b_rho)


def sample_bayes_linear(params, key, n_sample):
    w_mu, w_rho, b_mu, b_rho = params
    kw, kb = jax.random.split(key)
    w_eps = jax.random.normal(kw, (n_sample,) + w_mu.shape, jnp.float32)
    b_eps = jax.random.normal(kb, (n_sample,) + b_mu.shape, jnp.float32)
    w = w_mu[None] + jax.nn.softplus(w_rho)[None] * w_eps      # (n_sample, in, out)
    b = b_mu[None] + jax.nn.softplus(b_rho)[None] * b_eps      # (n_sample, out)
    return w, b


# ------------------------------ reference ---------------------------------- #
def ref_forward(x, w1, b1, w2, b2, w3, b3):
    a_dim = w3.shape[2] // 2

    def one(wi1, bi1, wi2, bi2, wi3, bi3):
        h1 = jax.nn.relu(x @ wi1 + bi1)
        h2 = jax.nn.relu(h1 @ wi2 + bi2)
        o = h2 @ wi3 + bi3
        return o[:, :a_dim], jax.nn.softplus(o[:, a_dim:])

    mus, vars_ = jax.vmap(one)(w1, b1, w2, b2, w3, b3)
    mu = mus.mean(0)
    un = mus.std(0, ddof=1) + jnp.sqrt(vars_).mean(0)
    return mu, un


# --------------------------------- main ------------------------------------ #
if __name__ == "__main__":
    # small shapes consistent with the module
    batch, s_dim, a_dim, h_dim, n_sample = 2, 16, 4, 32, 5

    key = jax.random.PRNGKey(0)
    kx, k1, k2, k3, ks1, ks2, ks3 = jax.random.split(key, 7)

    x = jax.random.normal(kx, (batch, s_dim), jnp.float32)

    fc1 = init_bayes_linear(k1, s_dim, h_dim)
    fc2 = init_bayes_linear(k2, h_dim, h_dim)
    fc3 = init_bayes_linear(k3, h_dim, 2 * a_dim)   # noise_level=None -> 2*o_dim head

    w1, b1 = sample_bayes_linear(fc1, ks1, n_sample)
    w2, b2 = sample_bayes_linear(fc2, ks2, n_sample)
    w3, b3 = sample_bayes_linear(fc3, ks3, n_sample)

    mu, un = b3dqn_forward(x, w1, b1, w2, b2, w3, b3)
    jax.block_until_ready((mu, un))

    mu_ref, un_ref = ref_forward(x, w1, b1, w2, b2, w3, b3)
    np.testing.assert_allclose(np.asarray(mu), np.asarray(mu_ref), rtol=1e-4, atol=1e-4)
    np.testing.assert_allclose(np.asarray(un), np.asarray(un_ref), rtol=1e-4, atol=1e-4)

    print("KERNEL_OK")
</pallas_src>

<mosaic_0001>
module attributes {stable_mosaic.version = 11 : i64} {
  func.func @_b3dqn_kernel(%arg0: i32, %arg1: memref<8x16xf32, #tpu.memory_space<vmem>>, %arg2: memref<16x160xf32, #tpu.memory_space<vmem>>, %arg3: memref<1x160xf32, #tpu.memory_space<vmem>>, %arg4: memref<160x160xf32, #tpu.memory_space<vmem>>, %arg5: memref<1x160xf32, #tpu.memory_space<vmem>>, %arg6: memref<5x32x256xf32, #tpu.memory_space<vmem>>, %arg7: memref<5x256xf32, #tpu.memory_space<vmem>>, %arg8: memref<8x128xf32, #tpu.memory_space<vmem>>, %arg9: memref<8x128xf32, #tpu.memory_space<vmem>>) attributes {dimension_semantics = [#tpu.dimension_semantics<arbitrary>], iteration_bounds = array<i64: 1>, scalar_prefetch = 0 : i64, scratch_operands = 0 : i64, tpu.core_type = #tpu.core_type<tc>, window_params = [{pipeline_mode = #tpu.pipeline_mode<synchronous>, transform_indices = @transform_0, window_bounds = array<i64: 8, 16>}, {pipeline_mode = #tpu.pipeline_mode<synchronous>, transform_indices = @transform_1, window_bounds = array<i64: 16, 160>}, {pipeline_mode = #tpu.pipeline_mode<synchronous>, transform_indices = @transform_2, window_bounds = array<i64: 1, 160>}, {pipeline_mode = #tpu.pipeline_mode<synchronous>, transform_indices = @transform_3, window_bounds = array<i64: 160, 160>}, {pipeline_mode = #tpu.pipeline_mode<synchronous>, transform_indices = @transform_4, window_bounds = array<i64: 1, 160>}, {pipeline_mode = #tpu.pipeline_mode<synchronous>, transform_indices = @transform_5, window_bounds = array<i64: 5, 32, 256>}, {pipeline_mode = #tpu.pipeline_mode<synchronous>, transform_indices = @transform_6, window_bounds = array<i64: 5, 256>}, {pipeline_mode = #tpu.pipeline_mode<synchronous>, transform_indices = @transform_7, window_bounds = array<i64: 8, 128>}, {pipeline_mode = #tpu.pipeline_mode<synchronous>, transform_indices = @transform_8, window_bounds = array<i64: 8, 128>}]} {
    %c0 = arith.constant 0 : index
    %c0_0 = arith.constant 0 : index
    %0 = vector.load %arg1[%c0, %c0_0] : memref<8x16xf32, #tpu.memory_space<vmem>>, vector<8x16xf32>
    %c0_1 = arith.constant 0 : index
    %c0_2 = arith.constant 0 : index
    %1 = vector.load %arg2[%c0_1, %c0_2] : memref<16x160xf32, #tpu.memory_space<vmem>>, vector<16x160xf32>
    %cst = arith.constant dense<0.000000e+00> : vector<8x160xf32>
    %2 = tpu.matmul %0, %1, %cst {dimension_numbers = #tpu.dot_dimension_numbers<[1], [0], [0], [1], [0, 0, 1, 1], [], []>} : vector<8x16xf32>, vector<16x160xf32>, vector<8x160xf32> -> vector<8x160xf32>
    %c0_3 = arith.constant 0 : index
    %c0_4 = arith.constant 0 : index
    %3 = vector.load %arg3[%c0_3, %c0_4] : memref<1x160xf32, #tpu.memory_space<vmem>>, vector<1x160xf32>
    %4 = vector.broadcast %3 : vector<1x160xf32> to vector<8x160xf32>
    %5 = arith.addf %2, %4 : vector<8x160xf32>
    %cst_5 = arith.constant 0.000000e+00 : f32
    %6 = vector.broadcast %cst_5 : f32 to vector<8x160xf32>
    %7 = arith.maximumf %5, %6 : vector<8x160xf32>
    %c0_6 = arith.constant 0 : index
    %c0_7 = arith.constant 0 : index
    %8 = vector.load %arg4[%c0_6, %c0_7] : memref<160x160xf32, #tpu.memory_space<vmem>>, vector<160x160xf32>
    %cst_8 = arith.constant dense<0.000000e+00> : vector<8x160xf32>
    %9 = tpu.matmul %7, %8, %cst_8 {dimension_numbers = #tpu.dot_dimension_numbers<[1], [0], [0], [1], [0, 0, 1, 1], [], []>} : vector<8x160xf32>, vector<160x160xf32>, vector<8x160xf32> -> vector<8x160xf32>
    %c0_9 = arith.constant 0 : index
    %c0_10 = arith.constant 0 : index
    %10 = vector.load %arg5[%c0_9, %c0_10] : memref<1x160xf32, #tpu.memory_space<vmem>>, vector<1x160xf32>
    %11 = vector.broadcast %10 : vector<1x160xf32> to vector<8x160xf32>
    %12 = arith.addf %9, %11 : vector<8x160xf32>
    %cst_11 = arith.constant 0.000000e+00 : f32
    %13 = vector.broadcast %cst_11 : f32 to vector<8x160xf32>
    %14 = arith.maximumf %12, %13 : vector<8x160xf32>
    %c0_12 = arith.constant 0 : index
    %c0_13 = arith.constant 0 : index
    %15 = vector.load %arg7[%c0_12, %c0_13] : memref<5x256xf32, #tpu.memory_space<vmem>>, vector<5x256xf32>
    %cst_14 = arith.constant 0.000000e+00 : f32
    %16 = vector.broadcast %cst_14 : f32 to vector<8x128xf32>
    %17 = vector.extract_strided_slice %14 {offsets = [0, 0], sizes = [8, 32], strides = [1, 1]} : vector<8x160xf32> to vector<8x32xf32>
    %c0_15 = arith.constant 0 : index
    %c0_16 = arith.constant 0 : index
    %c0_17 = arith.constant 0 : index
    %18 = vector.load %arg6[%c0_15, %c0_16, %c0_17] : memref<5x32x256xf32, #tpu.memory_space<vmem>>, vector<1x32x256xf32>
    %19 = vector.shape_cast %18 : vector<1x32x256xf32> to vector<32x256xf32>
    %cst_18 = arith.constant dense<0.000000e+00> : vector<8x256xf32>
    %20 = tpu.matmul %17, %19, %cst_18 {dimension_numbers = #tpu.dot_dimension_numbers<[1], [0], [0], [1], [0, 0, 1, 1], [], []>} : vector<8x32xf32>, vector<32x256xf32>, vector<8x256xf32> -> vector<8x256xf32>
    %21 = vector.extract_strided_slice %15 {offsets = [0, 0], sizes = [1, 256], strides = [1, 1]} : vector<5x256xf32> to vector<1x256xf32>
    %22 = vector.broadcast %21 : vector<1x256xf32> to vector<8x256xf32>
    %23 = arith.addf %20, %22 : vector<8x256xf32>
    %24 = vector.extract_strided_slice %23 {offsets = [0, 0], sizes = [8, 128], strides = [1, 1]} : vector<8x256xf32> to vector<8x128xf32>
    %25 = vector.extract_strided_slice %23 {offsets = [0, 128], sizes = [8, 128], strides = [1, 1]} : vector<8x256xf32> to vector<8x128xf32>
    %cst_19 = arith.constant 0.000000e+00 : f32
    %26 = vector.broadcast %cst_19 : f32 to vector<8x128xf32>
    %27 = arith.maximumf %25, %26 : vector<8x128xf32>
    %28 = vector.broadcast %cst_19 : f32 to vector<8x128xf32>
    %29 = arith.subf %25, %28 : vector<8x128xf32>
    %30 = arith.cmpf one, %29, %29 : vector<8x128xf32>
    %31 = vector.broadcast %cst_19 : f32 to vector<8x128xf32>
    %32 = arith.addf %25, %31 : vector<8x128xf32>
    %33 = math.absf %29 : vector<8x128xf32>
    %cst_20 = arith.constant 0.000000e+00 : f32
    %34 = vector.broadcast %cst_20 : f32 to vector<8x128xf32>
    %35 = arith.subf %34, %33 : vector<8x128xf32>
    %36 = math.exp %35 : vector<8x128xf32>
    %37 = math.log1p %36 : vector<8x128xf32>
    %38 = arith.addf %27, %37 : vector<8x128xf32>
    %39 = arith.select %30, %32, %38 : vector<8x128xi1>, vector<8x128xf32>
    %40 = math.sqrt %39 : vector<8x128xf32>
    %41 = arith.addf %16, %40 : vector<8x128xf32>
    %42 = vector.extract_strided_slice %14 {offsets = [0, 32], sizes = [8, 32], strides = [1, 1]} : vector<8x160xf32> to vector<8x32xf32>
    %c1 = arith.constant 1 : index
    %c0_21 = arith.constant 0 : index
    %c0_22 = arith.constant 0 : index
    %43 = vector.load %arg6[%c1, %c0_21, %c0_22] : memref<5x32x256xf32, #tpu.memory_space<vmem>>, vector<1x32x256xf32>
    %44 = vector.shape_cast %43 : vector<1x32x256xf32> to vector<32x256xf32>
    %cst_23 = arith.constant dense<0.000000e+00> : vector<8x256xf32>
    %45 = tpu.matmul %42, %44, %cst_23 {dimension_numbers = #tpu.dot_dimension_numbers<[1], [0], [0], [1], [0, 0, 1, 1], [], []>} : vector<8x32xf32>, vector<32x256xf32>, vector<8x256xf32> -> vector<8x256xf32>
    %46 = vector.extract_strided_slice %15 {offsets = [1, 0], sizes = [1, 256], strides = [1, 1]} : vector<5x256xf32> to vector<1x256xf32>
    %47 = vector.broadcast %46 : vector<1x256xf32> to vector<8x256xf32>
    %48 = arith.addf %45, %47 : vector<8x256xf32>
    %49 = vector.extract_strided_slice %48 {offsets = [0, 0], sizes = [8, 128], strides = [1, 1]} : vector<8x256xf32> to vector<8x128xf32>
    %50 = vector.extract_strided_slice %48 {offsets = [0, 128], sizes = [8, 128], strides = [1, 1]} : vector<8x256xf32> to vector<8x128xf32>
    %cst_24 = arith.constant 0.000000e+00 : f32
    %51 = vector.broadcast %cst_24 : f32 to vector<8x128xf32>
    %52 = arith.maximumf %50, %51 : vector<8x128xf32>
    %53 = vector.broadcast %cst_24 : f32 to vector<8x128xf32>
    %54 = arith.subf %50, %53 : vector<8x128xf32>
    %55 = arith.cmpf one, %54, %54 : vector<8x128xf32>
    %56 = vector.broadcast %cst_24 : f32 to vector<8x128xf32>
    %57 = arith.addf %50, %56 : vector<8x128xf32>
    %58 = math.absf %54 : vector<8x128xf32>
    %cst_25 = arith.constant 0.000000e+00 : f32
    %59 = vector.broadcast %cst_25 : f32 to vector<8x128xf32>
    %60 = arith.subf %59, %58 : vector<8x128xf32>
    %61 = math.exp %60 : vector<8x128xf32>
    %62 = math.log1p %61 : vector<8x128xf32>
    %63 = arith.addf %52, %62 : vector<8x128xf32>
    %64 = arith.select %55, %57, %63 : vector<8x128xi1>, vector<8x128xf32>
    %65 = math.sqrt %64 : vector<8x128xf32>
    %66 = arith.addf %41, %65 : vector<8x128xf32>
    %67 = vector.extract_strided_slice %14 {offsets = [0, 64], sizes = [8, 32], strides = [1, 1]} : vector<8x160xf32> to vector<8x32xf32>
    %c2 = arith.constant 2 : index
    %c0_26 = arith.constant 0 : index
    %c0_27 = arith.constant 0 : index
    %68 = vector.load %arg6[%c2, %c0_26, %c0_27] : memref<5x32x256xf32, #tpu.memory_space<vmem>>, vector<1x32x256xf32>
    %69 = vector.shape_cast %68 : vector<1x32x256xf32> to vector<32x256xf32>
    %cst_28 = arith.constant dense<0.000000e+00> : vector<8x256xf32>
    %70 = tpu.matmul %67, %69, %cst_28 {dimension_numbers = #tpu.dot_dimension_numbers<[1], [0], [0], [1], [0, 0, 1, 1], [], []>} : vector<8x32xf32>, vector<32x256xf32>, vector<8x256xf32> -> vector<8x256xf32>
    %71 = vector.extract_strided_slice %15 {offsets = [2, 0], sizes = [1, 256], strides = [1, 1]} : vector<5x256xf32> to vector<1x256xf32>
    %72 = vector.broadcast %71 : vector<1x256xf32> to vector<8x256xf32>
    %73 = arith.addf %70, %72 : vector<8x256xf32>
    %74 = vector.extract_strided_slice %73 {offsets = [0, 0], sizes = [8, 128], strides = [1, 1]} : vector<8x256xf32> to vector<8x128xf32>
    %75 = vector.extract_strided_slice %73 {offsets = [0, 128], sizes = [8, 128], strides = [1, 1]} : vector<8x256xf32> to vector<8x128xf32>
    %cst_29 = arith.constant 0.000000e+00 : f32
    %76 = vector.broadcast %cst_29 : f32 to vector<8x128xf32>
    %77 = arith.maximumf %75, %76 : vector<8x128xf32>
    %78 = vector.broadcast %cst_29 : f32 to vector<8x128xf32>
    %79 = arith.subf %75, %78 : vector<8x128xf32>
    %80 = arith.cmpf one, %79, %79 : vector<8x128xf32>
    %81 = vector.broadcast %cst_29 : f32 to vector<8x128xf32>
    %82 = arith.addf %75, %81 : vector<8x128xf32>
    %83 = math.absf %79 : vector<8x128xf32>
    %cst_30 = arith.constant 0.000000e+00 : f32
    %84 = vector.broadcast %cst_30 : f32 to vector<8x128xf32>
    %85 = arith.subf %84, %83 : vector<8x128xf32>
    %86 = math.exp %85 : vector<8x128xf32>
    %87 = math.log1p %86 : vector<8x128xf32>
    %88 = arith.addf %77, %87 : vector<8x128xf32>
    %89 = arith.select %80, %82, %88 : vector<8x128xi1>, vector<8x128xf32>
    %90 = math.sqrt %89 : vector<8x128xf32>
    %91 = arith.addf %66, %90 : vector<8x128xf32>
    %92 = vector.extract_strided_slice %14 {offsets = [0, 96], sizes = [8, 32], strides = [1, 1]} : vector<8x160xf32> to vector<8x32xf32>
    %c3 = arith.constant 3 : index
    %c0_31 = arith.constant 0 : index
    %c0_32 = arith.constant 0 : index
    %93 = vector.load %arg6[%c3, %c0_31, %c0_32] : memref<5x32x256xf32, #tpu.memory_space<vmem>>, vector<1x32x256xf32>
    %94 = vector.shape_cast %93 : vector<1x32x256xf32> to vector<32x256xf32>
    %cst_33 = arith.constant dense<0.000000e+00> : vector<8x256xf32>
    %95 = tpu.matmul %92, %94, %cst_33 {dimension_numbers = #tpu.dot_dimension_numbers<[1], [0], [0], [1], [0, 0, 1, 1], [], []>} : vector<8x32xf32>, vector<32x256xf32>, vector<8x256xf32> -> vector<8x256xf32>
    %96 = vector.extract_strided_slice %15 {offsets = [3, 0], sizes = [1, 256], strides = [1, 1]} : vector<5x256xf32> to vector<1x256xf32>
    %97 = vector.broadcast %96 : vector<1x256xf32> to vector<8x256xf32>
    %98 = arith.addf %95, %97 : vector<8x256xf32>
    %99 = vector.extract_strided_slice %98 {offsets = [0, 0], sizes = [8, 128], strides = [1, 1]} : vector<8x256xf32> to vector<8x128xf32>
    %100 = vector.extract_strided_slice %98 {offsets = [0, 128], sizes = [8, 128], strides = [1, 1]} : vector<8x256xf32> to vector<8x128xf32>
    %cst_34 = arith.constant 0.000000e+00 : f32
    %101 = vector.broadcast %cst_34 : f32 to vector<8x128xf32>
    %102 = arith.maximumf %100, %101 : vector<8x128xf32>
    %103 = vector.broadcast %cst_34 : f32 to vector<8x128xf32>
    %104 = arith.subf %100, %103 : vector<8x128xf32>
    %105 = arith.cmpf one, %104, %104 : vector<8x128xf32>
    %106 = vector.broadcast %cst_34 : f32 to vector<8x128xf32>
    %107 = arith.addf %100, %106 : vector<8x128xf32>
    %108 = math.absf %104 : vector<8x128xf32>
    %cst_35 = arith.constant 0.000000e+00 : f32
    %109 = vector.broadcast %cst_35 : f32 to vector<8x128xf32>
    %110 = arith.subf %109, %108 : vector<8x128xf32>
    %111 = math.exp %110 : vector<8x128xf32>
    %112 = math.log1p %111 : vector<8x128xf32>
    %113 = arith.addf %102, %112 : vector<8x128xf32>
    %114 = arith.select %105, %107, %113 : vector<8x128xi1>, vector<8x128xf32>
    %115 = math.sqrt %114 : vector<8x128xf32>
    %116 = arith.addf %91, %115 : vector<8x128xf32>
    %117 = vector.extract_strided_slice %14 {offsets = [0, 128], sizes = [8, 32], strides = [1, 1]} : vector<8x160xf32> to vector<8x32xf32>
    %c4 = arith.constant 4 : index
    %c0_36 = arith.constant 0 : index
    %c0_37 = arith.constant 0 : index
    %118 = vector.load %arg6[%c4, %c0_36, %c0_37] : memref<5x32x256xf32, #tpu.memory_space<vmem>>, vector<1x32x256xf32>
    %119 = vector.shape_cast %118 : vector<1x32x256xf32> to vector<32x256xf32>
    %cst_38 = arith.constant dense<0.000000e+00> : vector<8x256xf32>
    %120 = tpu.matmul %117, %119, %cst_38 {dimension_numbers = #tpu.dot_dimension_numbers<[1], [0], [0], [1], [0, 0, 1, 1], [], []>} : vector<8x32xf32>, vector<32x256xf32>, vector<8x256xf32> -> vector<8x256xf32>
    %121 = vector.extract_strided_slice %15 {offsets = [4, 0], sizes = [1, 256], strides = [1, 1]} : vector<5x256xf32> to vector<1x256xf32>
    %122 = vector.broadcast %121 : vector<1x256xf32> to vector<8x256xf32>
    %123 = arith.addf %120, %122 : vector<8x256xf32>
    %124 = vector.extract_strided_slice %123 {offsets = [0, 0], sizes = [8, 128], strides = [1, 1]} : vector<8x256xf32> to vector<8x128xf32>
    %125 = vector.extract_strided_slice %123 {offsets = [0, 128], sizes = [8, 128], strides = [1, 1]} : vector<8x256xf32> to vector<8x128xf32>
    %cst_39 = arith.constant 0.000000e+00 : f32
    %126 = vector.broadcast %cst_39 : f32 to vector<8x128xf32>
    %127 = arith.maximumf %125, %126 : vector<8x128xf32>
    %128 = vector.broadcast %cst_39 : f32 to vector<8x128xf32>
    %129 = arith.subf %125, %128 : vector<8x128xf32>
    %130 = arith.cmpf one, %129, %129 : vector<8x128xf32>
    %131 = vector.broadcast %cst_39 : f32 to vector<8x128xf32>
    %132 = arith.addf %125, %131 : vector<8x128xf32>
    %133 = math.absf %129 : vector<8x128xf32>
    %cst_40 = arith.constant 0.000000e+00 : f32
    %134 = vector.broadcast %cst_40 : f32 to vector<8x128xf32>
    %135 = arith.subf %134, %133 : vector<8x128xf32>
    %136 = math.exp %135 : vector<8x128xf32>
    %137 = math.log1p %136 : vector<8x128xf32>
    %138 = arith.addf %127, %137 : vector<8x128xf32>
    %139 = arith.select %130, %132, %138 : vector<8x128xi1>, vector<8x128xf32>
    %140 = math.sqrt %139 : vector<8x128xf32>
    %141 = arith.addf %116, %140 : vector<8x128xf32>
    %cst_41 = arith.constant 0.000000e+00 : f32
    %142 = vector.broadcast %cst_41 : f32 to vector<8x128xf32>
    %143 = arith.addf %142, %24 : vector<8x128xf32>
    %144 = arith.addf %143, %49 : vector<8x128xf32>
    %145 = arith.addf %144, %74 : vector<8x128xf32>
    %146 = arith.addf %145, %99 : vector<8x128xf32>
    %147 = arith.addf %146, %124 : vector<8x128xf32>
    %cst_42 = arith.constant 5.000000e+00 : f32
    %148 = vector.broadcast %cst_42 : f32 to vector<8x128xf32>
    %149 = arith.divf %147, %148 : vector<8x128xf32>
    %150 = arith.subf %24, %149 : vector<8x128xf32>
    %151 = arith.subf %24, %149 : vector<8x128xf32>
    %152 = arith.mulf %150, %151 : vector<8x128xf32>
    %cst_43 = arith.constant 0.000000e+00 : f32
    %153 = vector.broadcast %cst_43 : f32 to vector<8x128xf32>
    %154 = arith.addf %153, %152 : vector<8x128xf32>
    %155 = arith.subf %49, %149 : vector<8x128xf32>
    %156 = arith.subf %49, %149 : vector<8x128xf32>
    %157 = arith.mulf %155, %156 : vector<8x128xf32>
    %158 = arith.addf %154, %157 : vector<8x128xf32>
    %159 = arith.subf %74, %149 : vector<8x128xf32>
    %160 = arith.subf %74, %149 : vector<8x128xf32>
    %161 = arith.mulf %159, %160 : vector<8x128xf32>
    %162 = arith.addf %158, %161 : vector<8x128xf32>
    %163 = arith.subf %99, %149 : vector<8x128xf32>
    %164 = arith.subf %99, %149 : vector<8x128xf32>
    %165 = arith.mulf %163, %164 : vector<8x128xf32>
    %166 = arith.addf %162, %165 : vector<8x128xf32>
    %167 = arith.subf %124, %149 : vector<8x128xf32>
    %168 = arith.subf %124, %149 : vector<8x128xf32>
    %169 = arith.mulf %167, %168 : vector<8x128xf32>
    %170 = arith.addf %166, %169 : vector<8x128xf32>
    %cst_44 = arith.constant 4.000000e+00 : f32
    %171 = vector.broadcast %cst_44 : f32 to vector<8x128xf32>
    %172 = arith.divf %170, %171 : vector<8x128xf32>
    %c0_45 = arith.constant 0 : index
    %c0_46 = arith.constant 0 : index
    %173 = vector.load %arg8[%c0_45, %c0_46] : memref<8x128xf32, #tpu.memory_space<vmem>>, vector<8x128xf32>
    tpu.vector_store %arg8[%c0_45, %c0_46], %149 {strides = array<i32>} : memref<8x128xf32, #tpu.memory_space<vmem>>, vector<8x128xf32>,
    %174 = math.sqrt %172 : vector<8x128xf32>
    %cst_47 = arith.constant 5.000000e+00 : f32
    %175 = vector.broadcast %cst_47 : f32 to vector<8x128xf32>
    %176 = arith.divf %141, %175 : vector<8x128xf32>
    %177 = arith.addf %174, %176 : vector<8x128xf32>
    %c0_48 = arith.constant 0 : index
    %c0_49 = arith.constant 0 : index
    %178 = vector.load %arg9[%c0_48, %c0_49] : memref<8x128xf32, #tpu.memory_space<vmem>>, vector<8x128xf32>
    tpu.vector_store %arg9[%c0_48, %c0_49], %177 {strides = array<i32>} : memref<8x128xf32, #tpu.memory_space<vmem>>, vector<8x128xf32>,
    return
  }
  func.func @transform_0(%arg0: i32) -> (i32, i32) {
    %c0_i32 = arith.constant 0 : i32
    %c0_i32_0 = arith.constant 0 : i32
    %c0_i32_1 = arith.constant 0 : i32
    return %c0_i32, %c0_i32_0 : i32, i32
  }
  func.func @transform_1(%arg0: i32) -> (i32, i32) {
    %c0_i32 = arith.constant 0 : i32
    %c0_i32_0 = arith.constant 0 : i32
    %c0_i32_1 = arith.constant 0 : i32
    return %c0_i32, %c0_i32_0 : i32, i32
  }
  func.func @transform_2(%arg0: i32) -> (i32, i32) {
    %c0_i32 = arith.constant 0 : i32
    %c0_i32_0 = arith.constant 0 : i32
    %c0_i32_1 = arith.constant 0 : i32
    return %c0_i32, %c0_i32_0 : i32, i32
  }
  func.func @transform_3(%arg0: i32) -> (i32, i32) {
    %c0_i32 = arith.constant 0 : i32
    %c0_i32_0 = arith.constant 0 : i32
    %c0_i32_1 = arith.constant 0 : i32
    return %c0_i32, %c0_i32_0 : i32, i32
  }
  func.func @transform_4(%arg0: i32) -> (i32, i32) {
    %c0_i32 = arith.constant 0 : i32
    %c0_i32_0 = arith.constant 0 : i32
    %c0_i32_1 = arith.constant 0 : i32
    return %c0_i32, %c0_i32_0 : i32, i32
  }
  func.func @transform_5(%arg0: i32) -> (i32, i32, i32) {
    %c0_i32 = arith.constant 0 : i32
    %c0_i32_0 = arith.constant 0 : i32
    %c0_i32_1 = arith.constant 0 : i32
    %c0_i32_2 = arith.constant 0 : i32
    return %c0_i32, %c0_i32_0, %c0_i32_1 : i32, i32, i32
  }
  func.func @transform_6(%arg0: i32) -> (i32, i32) {
    %c0_i32 = arith.constant 0 : i32
    %c0_i32_0 = arith.constant 0 : i32
    %c0_i32_1 = arith.constant 0 : i32
    return %c0_i32, %c0_i32_0 : i32, i32
  }
  func.func @transform_7(%arg0: i32) -> (i32, i32) {
    %c0_i32 = arith.constant 0 : i32
    %c0_i32_0 = arith.constant 0 : i32
    %c0_i32_1 = arith.constant 0 : i32
    return %c0_i32, %c0_i32_0 : i32, i32
  }
  func.func @transform_8(%arg0: i32) -> (i32, i32) {
    %c0_i32 = arith.constant 0 : i32
    %c0_i32_0 = arith.constant 0 : i32
    %c0_i32_1 = arith.constant 0 : i32
    return %c0_i32, %c0_i32_0 : i32, i32
  }
}

</mosaic_0001>

<llo_original>
// kernel: tpu_custom_call.1
$region0: #{tpu_custom_call.1}
  #allocation0 [shape = 'u32[]', space=smem, size = 0x4, offset = 0x4, fixed_abs, tag = 'smem constant byte address 0x4 - core index']
  #allocation1 [shape = 'u32[144,128]{1,0:T(1,128)}', space=vmem, size = 0x12000, scoped, tag = 'internal scratch']
  %s0 = inlined_call_operand.hbm [shape: f32[8,16], index: 0, kind: input, shape index: {}]
  %s1 = inlined_call_operand.hbm [shape: f32[16,160], index: 1, kind: input, shape index: {}]
  %s2 = inlined_call_operand.vmem [shape: f32[1,160], index: 2, kind: input, shape index: {}]
  %s3 = inlined_call_operand.hbm [shape: f32[160,160], index: 3, kind: input, shape index: {}]
  %s4 = inlined_call_operand.vmem [shape: f32[1,160], index: 4, kind: input, shape index: {}]
  %s5 = inlined_call_operand.hbm [shape: f32[5,32,256], index: 5, kind: input, shape index: {}]
  %s6 = inlined_call_operand.hbm [shape: f32[5,256], index: 6, kind: input, shape index: {}]
  %s7 = inlined_call_operand.hbm [shape: f32[8,128], index: 7, kind: output, shape index: {0}]
  %s8 = inlined_call_operand.hbm [shape: f32[8,128], index: 8, kind: output, shape index: {1}]
  %9 = xla_tuple %s7, %s8
  %s10 = sld [smem:[#allocation0]]
  $region66: #{tpu_custom_call.1} parent=0
    _
  %s12 = ssub.s32 1, %s10
  %s13 = scalar_select 0, %s12, %s10
  $region1: #{tpu_custom_call.1} parent=0
    #allocation2 [shape = 'u8[4096]{0}', space=vmem, size = 0x1000, scoped, tag = 'input window, operand 0, single buffered']
    #allocation3 [shape = 's32[1]{0}', space=sflag, size = 0x4, scoped, tag = 'scoped memory for tpu_custom_call.1']
    #allocation4 [shape = 's32[1]{0}', space=sflag, size = 0x4, scoped, tag = 'scoped memory for tpu_custom_call.1']
    #allocation5 [shape = 'u8[16384]{0}', space=vmem, size = 0x4000, scoped, tag = 'input window, operand 1, single buffered']
    #allocation6 [shape = 's32[1]{0}', space=sflag, size = 0x4, scoped, tag = 'scoped memory for tpu_custom_call.1']
    #allocation7 [shape = 'u8[163840]{0}', space=vmem, size = 0x28000, scoped, tag = 'input window, operand 3, single buffered']
    #allocation8 [shape = 'u8[163840]{0}', space=vmem, size = 0x28000, scoped, tag = 'input window, operand 5, single buffered']
    #allocation9 [shape = 's32[1]{0}', space=sflag, size = 0x4, scoped, tag = 'scoped memory for tpu_custom_call.1']
    #allocation10 [shape = 'u8[8192]{0}', space=vmem, size = 0x2000, scoped, tag = 'input window, operand 6, single buffered']
    #allocation11 [shape = 'u8[4096]{0}', space=vmem, size = 0x1000, scoped, tag = 'output window, operand 0, single buffered']
    #allocation12 [shape = 'u8[4096]{0}', space=vmem, size = 0x1000, scoped, tag = 'output window, operand 1, single buffered']
    #allocation13 [shape = 's32[1]{0}', space=sflag, size = 0x4, scoped, tag = 'scoped memory for tpu_custom_call.1']
    %14 = vsyncpa [#allocation3], 0
    %15 = vsyncpa [#allocation6], 0
    %16 = vsyncpa [#allocation9], 0
    %17 = vsyncpa [#allocation4], 0
    %18 = vsyncpa [#allocation13], 0
    // Predicated region
    $region2: #{tpu_custom_call.1} parent=1 // pred_check
      _
    $region3: #{tpu_custom_call.1} parent=1 // pred_check_branch
      %20 = sbr.rel (0) target = $region5
    $region4: #{tpu_custom_call.1} parent=1 // pred_region
      %s22 = ssub.s32 128, 128
      %23 = vsyncadd [#allocation3], %s22
      %s25 = sshll.u32 [#allocation2], 4
      %s26 = int_to_ptr.vmem [resolvable:$true] %s25
      %28 = dma.hbm_to_vmem [thread:$0]  %s0, 128, %s26, [#allocation3]
    $region5: #{tpu_custom_call.1} parent=1 // pred_fallthru
      _
    // Predicated region
    $region6: #{tpu_custom_call.1} parent=1 // pred_check
      _
    $region7: #{tpu_custom_call.1} parent=1 // pred_check_branch
      %30 = sbr.rel (0) target = $region9
    $region8: #{tpu_custom_call.1} parent=1 // pred_region
      %s32 = ssub.s32 512, 512
      %33 = vsyncadd [#allocation6], %s32
      %s34 = sshll.u32 [#allocation5], 4
      %s35 = int_to_ptr.vmem [resolvable:$true] %s34
      %40 = dma.hbm_to_vmem [thread:$0]  %s1, 512, %s35, [#allocation6], 256, 256, 16
    $region9: #{tpu_custom_call.1} parent=1 // pred_fallthru
      _
    // Predicated region
    $region10: #{tpu_custom_call.1} parent=1 // pred_check
      _
    $region11: #{tpu_custom_call.1} parent=1 // pred_check_branch
      %42 = sbr.rel (0) target = $region13
    $region12: #{tpu_custom_call.1} parent=1 // pred_region
      _
    $region13: #{tpu_custom_call.1} parent=1 // pred_fallthru
      _
    // Predicated region
    $region14: #{tpu_custom_call.1} parent=1 // pred_check
      _
    $region15: #{tpu_custom_call.1} parent=1 // pred_check_branch
      %44 = sbr.rel (0) target = $region17
    $region16: #{tpu_custom_call.1} parent=1 // pred_region
      %s46 = ssub.s32 5120, 5120
      %47 = vsyncadd [#allocation6], %s46
      %s48 = sshll.u32 [#allocation7], 4
      %s49 = int_to_ptr.vmem [resolvable:$true] %s48
      %54 = dma.hbm_to_vmem [thread:$0]  %s3, 5120, %s49, [#allocation6], 256, 256, 16
    $region17: #{tpu_custom_call.1} parent=1 // pred_fallthru
      _
    // Predicated region
    $region18: #{tpu_custom_call.1} parent=1 // pred_check
      _
    $region19: #{tpu_custom_call.1} parent=1 // pred_check_branch
      %56 = sbr.rel (0) target = $region21
    $region20: #{tpu_custom_call.1} parent=1 // pred_region
      _
    $region21: #{tpu_custom_call.1} parent=1 // pred_fallthru
      _
    // Predicated region
    $region22: #{tpu_custom_call.1} parent=1 // pred_check
      _
    $region23: #{tpu_custom_call.1} parent=1 // pred_check_branch
      %58 = sbr.rel (0) target = $region25
    $region24: #{tpu_custom_call.1} parent=1 // pred_region
      %s60 = ssub.s32 5120, 5120
      %61 = vsyncadd [#allocation9], %s60
      %s62 = sshll.u32 [#allocation8], 4
      %s63 = int_to_ptr.vmem [resolvable:$true] %s62
      %68 = dma.hbm_to_vmem [thread:$0]  %s5, 5120, %s63, [#allocation9], 256, 256, 16
    $region25: #{tpu_custom_call.1} parent=1 // pred_fallthru
      _
    // Predicated region
    $region26: #{tpu_custom_call.1} parent=1 // pred_check
      _
    $region27: #{tpu_custom_call.1} parent=1 // pred_check_branch
      %70 = sbr.rel (0) target = $region29
    $region28: #{tpu_custom_call.1} parent=1 // pred_region
      %s72 = ssub.s32 256, 256
      %73 = vsyncadd [#allocation9], %s72
      %s75 = sshll.u32 [#allocation10], 4
      %s76 = int_to_ptr.vmem [resolvable:$true] %s75
      %78 = dma.hbm_to_vmem [thread:$0]  %s6, 256, %s76, [#allocation9]
    $region29: #{tpu_custom_call.1} parent=1 // pred_fallthru
      _
    // Predicated region
    $region30: #{tpu_custom_call.1} parent=1 // pred_check
      _
    $region31: #{tpu_custom_call.1} parent=1 // pred_check_branch
      %80 = sbr.rel (0) target = $region33
    $region32: #{tpu_custom_call.1} parent=1 // pred_region
      %81 = dma.done [#allocation3], 128
    $region33: #{tpu_custom_call.1} parent=1 // pred_fallthru
      _
    // Predicated region
    $region34: #{tpu_custom_call.1} parent=1 // pred_check
      _
    $region35: #{tpu_custom_call.1} parent=1 // pred_check_branch
      %83 = sbr.rel (0) target = $region37
    $region36: #{tpu_custom_call.1} parent=1 // pred_region
      %84 = dma.done [#allocation6], 512
    $region37: #{tpu_custom_call.1} parent=1 // pred_fallthru
      _
    // Predicated region
    $region38: #{tpu_custom_call.1} parent=1 // pred_check
      _
    $region39: #{tpu_custom_call.1} parent=1 // pred_check_branch
      %86 = sbr.rel (0) target = $region41
    $region40: #{tpu_custom_call.1} parent=1 // pred_region
      %87 = dma.done [#allocation6], 5120
    $region41: #{tpu_custom_call.1} parent=1 // pred_fallthru
      _
    // Predicated region
    $region42: #{tpu_custom_call.1} parent=1 // pred_check
      _
    $region43: #{tpu_custom_call.1} parent=1 // pred_check_branch
      %89 = sbr.rel (0) target = $region45
    $region44: #{tpu_custom_call.1} parent=1 // pred_region
      %90 = dma.done [#allocation9], 5120
    $region45: #{tpu_custom_call.1} parent=1 // pred_fallthru
      _
    // Predicated region
    $region46: #{tpu_custom_call.1} parent=1 // pred_check
      _
    $region47: #{tpu_custom_call.1} parent=1 // pred_check_branch
      %92 = sbr.rel (0) target = $region49
    $region48: #{tpu_custom_call.1} parent=1 // pred_region
      %93 = dma.done [#allocation9], 256
    $region49: #{tpu_custom_call.1} parent=1 // pred_fallthru
      _
    %v94 = vld [vmem:[#allocation2] sm:$0xff]
    %v95 = vld [vmem:[#allocation5] sm:$0xff]
    %v96 = vld [vmem:[#allocation5 + $0x8] sm:$0xff]
    %v97 = vld [vmem:[#allocation5 + $0x10] sm:$0xff]
    %v98 = vld [vmem:[#allocation5 + $0x18] sm:$0xff]
    %v99 = vld [vmem:[%s2] sm:$0x3]
    %v101 = vlaneseq
    %v102 = vshrl.u32 %v101, 7
    %v103 = vsub.s32 0, %v102
    %v104 = vrot.slane %v99, %v103
    %v105 = vlaneseq
    %v106 = vshrl.u32 %v105, 7
    %v107 = vsub.s32 1, %v106
    %v108 = vrot.slane %v99, %v107
    %vm111 = vcmask 130048
    %v113 = vsel %vm111, %v94, 0
    %115 = vmatprep.subr.mxu0 0.0
    %116 = vmatpush1.msra.mxu0 0.0
    %117 = vmatprep.subr.mxu0 0.0
    %118 = vmatpush1.msra.mxu0 0.0
    %119 = vmatprep.subr.mxu0 0.0
    %120 = vmatpush1.msra.mxu0 0.0
    %121 = vmatprep.subr.mxu0 0.0
    %122 = vmatpush1.msra.mxu0 0.0
    %123 = vmatprep.subr.mxu0 0.0
    %124 = vmatpush1.msra.mxu0 0.0
    %125 = vmatprep.subr.mxu0 0.0
    %126 = vmatpush1.msra.mxu0 0.0
    %127 = vmatprep.subr.mxu0 0.0
    %128 = vmatpush1.msra.mxu0 0.0
    %129 = vmatprep.subr.mxu0 0.0
    %130 = vmatpush1.msra.mxu0 0.0
    %131 = vmatprep.subr.mxu0 0.0
    %132 = vmatpush1.msra.mxu0 0.0
    %133 = vmatprep.subr.mxu0 0.0
    %134 = vmatpush1.msra.mxu0 0.0
    %135 = vmatprep.subr.mxu0 0.0
    %136 = vmatpush1.msra.mxu0 0.0
    %137 = vmatprep.subr.mxu0 0.0
    %138 = vmatpush1.msra.mxu0 0.0
    %139 = vmatprep.subr.mxu0 0.0
    %140 = vmatpush1.msra.mxu0 0.0
    %141 = vmatprep.subr.mxu0 0.0
    %142 = vmatpush1.msra.mxu0 0.0
    %143 = vmatprep.subr.mxu0 %v98
    %144 = vmatpush1.msra.mxu0 %v97
    %145 = vmatprep.subr.mxu0 %v96
    %146 = vmatpush1.msra.mxu0 %v95
    %147 = vmatprep.subr.mxu0 0.0
    %148 = vmatpush2.msra.mxu0 0.0
    %149 = vmatprep.subr.mxu0 0.0
    %150 = vmatpush2.msra.mxu0 0.0
    %151 = vmatprep.subr.mxu0 0.0
    %152 = vmatpush2.msra.mxu0 0.0
    %153 = vmatprep.subr.mxu0 0.0
    %154 = vmatpush2.msra.mxu0 0.0
    %155 = vmatprep.subr.mxu0 0.0
    %156 = vmatpush2.msra.mxu0 0.0
    %157 = vmatprep.subr.mxu0 0.0
    %158 = vmatpush2.msra.mxu0 0.0
    %159 = vmatprep.subr.mxu0 0.0
    %160 = vmatpush2.msra.mxu0 0.0
    %161 = vmatprep.subr.mxu0 0.0
    %162 = vmatpush2.msra.mxu0 0.0
    %163 = vmatprep.subr.mxu0 0.0
    %164 = vmatpush2.msra.mxu0 0.0
    %165 = vmatprep.subr.mxu0 0.0
    %166 = vmatpush2.msra.mxu0 0.0
    %167 = vmatprep.subr.mxu0 0.0
    %168 = vmatpush2.msra.mxu0 0.0
    %169 = vmatprep.subr.mxu0 0.0
    %170 = vmatpush2.msra.mxu0 0.0
    %171 = vmatprep.subr.mxu0 0.0
    %172 = vmatpush2.msra.mxu0 0.0
    %173 = vmatprep.subr.mxu0 0.0
    %174 = vmatpush2.msra.mxu0 0.0
    %175 = vmatprep.subr.mxu0 0.0
    %176 = vmatpush2.msra.mxu0 0.0
    %177 = vmatprep.subr.mxu0 0.0
    %178 = vmatpush2.msra.mxu0 0.0
    %179 = vmatprep.mubr.f32.mxu0 0.0
    %180 = vmatmul.mubr.f32.gmra.mxu0 %v113
    %v181 = vpop.f32.mrf.mxu0
    %v182 = vadd.f32 %v104, %v181
    %v183 = vpop.f32.mrf.mxu0
    %v184 = vadd.f32 %v108, %v183
    %185 = vdwg.mxu0
    %v186 = vmax.f32 %v182, 0.0
    %v187 = vmax.f32 %v184, 0.0
    %v188 = vld [vmem:[#allocation7] sm:$0xff]
    %v189 = vld [vmem:[#allocation7 + $0x8] sm:$0xff]
    %v190 = vld [vmem:[#allocation7 + $0x10] sm:$0xff]
    %v191 = vld [vmem:[#allocation7 + $0x18] sm:$0xff]
    %v192 = vld [vmem:[#allocation7 + $0x20] sm:$0xff]
    %v193 = vld [vmem:[#allocation7 + $0x28] sm:$0xff]
    %v194 = vld [vmem:[#allocation7 + $0x30] sm:$0xff]
    %v195 = vld [vmem:[#allocation7 + $0x38] sm:$0xff]
    %v196 = vld [vmem:[#allocation7 + $0x40] sm:$0xff]
    %v197 = vld [vmem:[#allocation7 + $0x48] sm:$0xff]
    %v198 = vld [vmem:[#allocation7 + $0x50] sm:$0xff]
    %v199 = vld [vmem:[#allocation7 + $0x58] sm:$0xff]
    %v200 = vld [vmem:[#allocation7 + $0x60] sm:$0xff]
    %v201 = vld [vmem:[#allocation7 + $0x68] sm:$0xff]
    %v202 = vld [vmem:[#allocation7 + $0x70] sm:$0xff]
    %v203 = vld [vmem:[#allocation7 + $0x78] sm:$0xff]
    %v204 = vld [vmem:[#allocation7 + $0x80] sm:$0xff]
    %v205 = vld [vmem:[#allocation7 + $0x88] sm:$0xff]
    %v206 = vld [vmem:[#allocation7 + $0x90] sm:$0xff]
    %v207 = vld [vmem:[#allocation7 + $0x98] sm:$0xff]
    %v208 = vld [vmem:[#allocation7 + $0xa0] sm:$0xff]
    %v209 = vld [vmem:[#allocation7 + $0xa8] sm:$0xff]
    %v210 = vld [vmem:[#allocation7 + $0xb0] sm:$0xff]
    %v211 = vld [vmem:[#allocation7 + $0xb8] sm:$0xff]
    %v212 = vld [vmem:[#allocation7 + $0xc0] sm:$0xff]
    %v213 = vld [vmem:[#allocation7 + $0xc8] sm:$0xff]
    %v214 = vld [vmem:[#allocation7 + $0xd0] sm:$0xff]
    %v215 = vld [vmem:[#allocation7 + $0xd8] sm:$0xff]
    %v216 = vld [vmem:[#allocation7 + $0xe0] sm:$0xff]
    %v217 = vld [vmem:[#allocation7 + $0xe8] sm:$0xff]
    %v218 = vld [vmem:[#allocation7 + $0xf0] sm:$0xff]
    %v219 = vld [vmem:[#allocation7 + $0xf8] sm:$0xff]
    %v220 = vld [vmem:[#allocation7 + $0x100] sm:$0xff]
    %v221 = vld [vmem:[#allocation7 + $0x108] sm:$0xff]
    %v222 = vld [vmem:[#allocation7 + $0x110] sm:$0xff]
    %v223 = vld [vmem:[#allocation7 + $0x118] sm:$0xff]
    %v224 = vld [vmem:[#allocation7 + $0x120] sm:$0xff]
    %v225 = vld [vmem:[#allocation7 + $0x128] sm:$0xff]
    %v226 = vld [vmem:[#allocation7 + $0x130] sm:$0xff]
    %v227 = vld [vmem:[#allocation7 + $0x138] sm:$0xff]
    %v228 = vld [vmem:[%s4] sm:$0x3]
    %v230 = vlaneseq
    %v231 = vshrl.u32 %v230, 7
    %v232 = vsub.s32 0, %v231
    %v233 = vrot.slane %v228, %v232
    %v234 = vlaneseq
    %v235 = vshrl.u32 %v234, 7
    %v236 = vsub.s32 1, %v235
    %v237 = vrot.slane %v228, %v236
    %vm240 = vcmask 261120
    %v242 = vsel %vm240, %v187, 0
    %244 = vmatprep.subr.mxu0 %v219
    %245 = vmatpush1.msra.mxu0 %v218
    %246 = vmatprep.subr.mxu0 %v217
    %247 = vmatpush1.msra.mxu0 %v216
    %248 = vmatprep.subr.mxu0 %v215
    %249 = vmatpush1.msra.mxu0 %v214
    %250 = vmatprep.subr.mxu0 %v213
    %251 = vmatpush1.msra.mxu0 %v212
    %252 = vmatprep.subr.mxu0 %v211
    %253 = vmatpush1.msra.mxu0 %v210
    %254 = vmatprep.subr.mxu0 %v209
    %255 = vmatpush1.msra.mxu0 %v208
    %256 = vmatprep.subr.mxu0 %v207
    %257 = vmatpush1.msra.mxu0 %v206
    %258 = vmatprep.subr.mxu0 %v205
    %259 = vmatpush1.msra.mxu0 %v204
    %260 = vmatprep.subr.mxu0 %v203
    %261 = vmatpush1.msra.mxu0 %v202
    %262 = vmatprep.subr.mxu0 %v201
    %263 = vmatpush1.msra.mxu0 %v200
    %264 = vmatprep.subr.mxu0 %v199
    %265 = vmatpush1.msra.mxu0 %v198
    %266 = vmatprep.subr.mxu0 %v197
    %267 = vmatpush1.msra.mxu0 %v196
    %268 = vmatprep.subr.mxu0 %v195
    %269 = vmatpush1.msra.mxu0 %v194
    %270 = vmatprep.subr.mxu0 %v193
    %271 = vmatpush1.msra.mxu0 %v192
    %272 = vmatprep.subr.mxu0 %v191
    %273 = vmatpush1.msra.mxu0 %v190
    %274 = vmatprep.subr.mxu0 %v189
    %275 = vmatpush1.msra.mxu0 %v188
    %276 = vmatprep.subr.mxu0 0.0
    %277 = vmatpush2.msra.mxu0 0.0
    %278 = vmatprep.subr.mxu0 0.0
    %279 = vmatpush2.msra.mxu0 0.0
    %280 = vmatprep.subr.mxu0 0.0
    %281 = vmatpush2.msra.mxu0 0.0
    %282 = vmatprep.subr.mxu0 0.0
    %283 = vmatpush2.msra.mxu0 0.0
    %284 = vmatprep.subr.mxu0 0.0
    %285 = vmatpush2.msra.mxu0 0.0
    %286 = vmatprep.subr.mxu0 0.0
    %287 = vmatpush2.msra.mxu0 0.0
    %288 = vmatprep.subr.mxu0 0.0
    %289 = vmatpush2.msra.mxu0 0.0
    %290 = vmatprep.subr.mxu0 0.0
    %291 = vmatpush2.msra.mxu0 0.0
    %292 = vmatprep.subr.mxu0 0.0
    %293 = vmatpush2.msra.mxu0 0.0
    %294 = vmatprep.subr.mxu0 0.0
    %295 = vmatpush2.msra.mxu0 0.0
    %296 = vmatprep.subr.mxu0 0.0
    %297 = vmatpush2.msra.mxu0 0.0
    %298 = vmatprep.subr.mxu0 0.0
    %299 = vmatpush2.msra.mxu0 0.0
    %300 = vmatprep.subr.mxu0 %v227
    %301 = vmatpush2.msra.mxu0 %v226
    %302 = vmatprep.subr.mxu0 %v225
    %303 = vmatpush2.msra.mxu0 %v224
    %304 = vmatprep.subr.mxu0 %v223
    %305 = vmatpush2.msra.mxu0 %v222
    %306 = vmatprep.subr.mxu0 %v221
    %307 = vmatpush2.msra.mxu0 %v220
    %308 = vmatprep.mubr.f32.mxu0 %v242
    %309 = vmatmul.mubr.f32.gmra.mxu0 %v186
    %v310 = vpop.f32.mrf.mxu0
    %v311 = vadd.f32 %v233, %v310
    %v312 = vpop.f32.mrf.mxu0
    %v313 = vadd.f32 %v237, %v312
    %314 = vdwg.mxu0
    %v315 = vmax.f32 %v311, 0.0
    %v316 = vmax.f32 %v313, 0.0
    %v317 = vld [vmem:[#allocation10] sm:$0x1f]
    %v318 = vld [vmem:[#allocation10 + $0x8] sm:$0x1f]
    %v319 = vld [vmem:[#allocation8] sm:$0xff]
    %v320 = vld [vmem:[#allocation8 + $0x8] sm:$0xff]
    %v321 = vld [vmem:[#allocation8 + $0x10] sm:$0xff]
    %v322 = vld [vmem:[#allocation8 + $0x18] sm:$0xff]
    %v323 = vld [vmem:[#allocation8 + $0x20] sm:$0xff]
    %v324 = vld [vmem:[#allocation8 + $0x28] sm:$0xff]
    %v325 = vld [vmem:[#allocation8 + $0x30] sm:$0xff]
    %v326 = vld [vmem:[#allocation8 + $0x38] sm:$0xff]
    %v327 = vlaneseq
    %v328 = vshrl.u32 %v327, 7
    %v329 = vsub.s32 0, %v328
    %v330 = vrot.slane %v317, %v329
    %v331 = vlaneseq
    %v332 = vshrl.u32 %v331, 7
    %v333 = vsub.s32 0, %v332
    %v334 = vrot.slane %v318, %v333
    %v336 = vsel %vm240, %v315, 0
    %338 = vmatprep.subr.mxu0 0.0
    %339 = vmatpush1.msra.mxu0 0.0
    %340 = vmatprep.subr.mxu0 0.0
    %341 = vmatpush1.msra.mxu0 0.0
    %342 = vmatprep.subr.mxu0 0.0
    %343 = vmatpush1.msra.mxu0 0.0
    %344 = vmatprep.subr.mxu0 0.0
    %345 = vmatpush1.msra.mxu0 0.0
    %346 = vmatprep.subr.mxu0 0.0
    %347 = vmatpush1.msra.mxu0 0.0
    %348 = vmatprep.subr.mxu0 0.0
    %349 = vmatpush1.msra.mxu0 0.0
    %350 = vmatprep.subr.mxu0 0.0
    %351 = vmatpush1.msra.mxu0 0.0
    %352 = vmatprep.subr.mxu0 0.0
    %353 = vmatpush1.msra.mxu0 0.0
    %354 = vmatprep.subr.mxu0 0.0
    %355 = vmatpush1.msra.mxu0 0.0
    %356 = vmatprep.subr.mxu0 0.0
    %357 = vmatpush1.msra.mxu0 0.0
    %358 = vmatprep.subr.mxu0 0.0
    %359 = vmatpush1.msra.mxu0 0.0
    %360 = vmatprep.subr.mxu0 0.0
    %361 = vmatpush1.msra.mxu0 0.0
    %362 = vmatprep.subr.mxu0 %v326
    %363 = vmatpush1.msra.mxu0 %v325
    %364 = vmatprep.subr.mxu0 %v324
    %365 = vmatpush1.msra.mxu0 %v323
    %366 = vmatprep.subr.mxu0 %v322
    %367 = vmatpush1.msra.mxu0 %v321
    %368 = vmatprep.subr.mxu0 %v320
    %369 = vmatpush1.msra.mxu0 %v319
    %370 = vmatprep.subr.mxu0 0.0
    %371 = vmatpush2.msra.mxu0 0.0
    %372 = vmatprep.subr.mxu0 0.0
    %373 = vmatpush2.msra.mxu0 0.0
    %374 = vmatprep.subr.mxu0 0.0
    %375 = vmatpush2.msra.mxu0 0.0
    %376 = vmatprep.subr.mxu0 0.0
    %377 = vmatpush2.msra.mxu0 0.0
    %378 = vmatprep.subr.mxu0 0.0
    %379 = vmatpush2.msra.mxu0 0.0
    %380 = vmatprep.subr.mxu0 0.0
    %381 = vmatpush2.msra.mxu0 0.0
    %382 = vmatprep.subr.mxu0 0.0
    %383 = vmatpush2.msra.mxu0 0.0
    %384 = vmatprep.subr.mxu0 0.0
    %385 = vmatpush2.msra.mxu0 0.0
    %386 = vmatprep.subr.mxu0 0.0
    %387 = vmatpush2.msra.mxu0 0.0
    %388 = vmatprep.subr.mxu0 0.0
    %389 = vmatpush2.msra.mxu0 0.0
    %390 = vmatprep.subr.mxu0 0.0
    %391 = vmatpush2.msra.mxu0 0.0
    %392 = vmatprep.subr.mxu0 0.0
    %393 = vmatpush2.msra.mxu0 0.0
    %394 = vmatprep.subr.mxu0 0.0
    %395 = vmatpush2.msra.mxu0 0.0
    %396 = vmatprep.subr.mxu0 0.0
    %397 = vmatpush2.msra.mxu0 0.0
    %398 = vmatprep.subr.mxu0 0.0
    %399 = vmatpush2.msra.mxu0 0.0
    %400 = vmatprep.subr.mxu0 0.0
    %401 = vmatpush2.msra.mxu0 0.0
    %402 = vmatprep.mubr.f32.mxu0 0.0
    %403 = vmatmul.mubr.f32.gmra.mxu0 %v336
    %v404 = vpop.f32.mrf.mxu0
    %v405 = vadd.f32 %v330, %v404
    %v406 = vpop.f32.mrf.mxu0
    %v407 = vadd.f32 %v334, %v406
    %408 = vdwg.mxu0
    %v409 = vmax.f32 %v407, 0.0
    %vm410 = vcmp.ne.f32.partialorder %v407, %v407
    %v411 = vadd.f32 %v407, 0.0
    %v412 = vand.u32 2147483647, %v407
    %v413 = vsub.f32 0.0, %v412
    %v414 = vmul.f32 %v413, 1.442695
    %v415 = vpow.pop %v414
    %v416 = vadd.f32 %v415, 1.0
    %v417 = vlog2.pop %v416
    %v418 = vmul.f32 %v417, 0.6931472
    %v419 = vmul.f32 -0.5, %v415
    %v420 = vadd.f32 %v419, 1.0
    %v421 = vmul.f32 %v420, %v415
    %v422 = vand.u32 2147483647, %v415
    %vm423 = vcmp.lt.f32.partialorder %v422, 0.0004427343
    %v424 = vsel %vm423, %v421, %v418
    %v425 = vadd.f32 %v409, %v424
    %v426 = vsel %vm410, %v411, %v425
    %v427 = vrsqrt.pop %v426
    %v428 = vmul.f32 %v426, %v427
    %vm429 = vcmp.eq.f32.partialorder %v426, inf
    %v430 = vsel %vm429, %v426, %v428
    %vm431 = vcmp.eq.f32.partialorder %v426, 0.0
    %v432 = vand.u32 %v426, 2147483648
    %v433 = vsel %vm431, %v432, %v430
    %v434 = vadd.f32 %v433, 0.0
    %s435 = scalar_lea.vmem [#allocation8], 64
    %v436 = vld [vmem:[%s435] sm:$0xff]
    %v437 = vld [vmem:[%s435 + $0x8] sm:$0xff]
    %v438 = vld [vmem:[%s435 + $0x10] sm:$0xff]
    %v439 = vld [vmem:[%s435 + $0x18] sm:$0xff]
    %v440 = vld [vmem:[%s435 + $0x20] sm:$0xff]
    %v441 = vld [vmem:[%s435 + $0x28] sm:$0xff]
    %v442 = vld [vmem:[%s435 + $0x30] sm:$0xff]
    %v443 = vld [vmem:[%s435 + $0x38] sm:$0xff]
    %v444 = vlaneseq
    %v445 = vshrl.u32 %v444, 7
    %v446 = vsub.s32 1, %v445
    %v447 = vrot.slane %v317, %v446
    %v448 = vlaneseq
    %v449 = vshrl.u32 %v448, 7
    %v450 = vsub.s32 1, %v449
    %v451 = vrot.slane %v318, %v450
    %452 = vrot.lane.b32.xlu0 %v315, 96
    %v453 = vpop.permute.xlu0 %452
    %v454 = vsel %vm240, %v453, 0
    %456 = vmatprep.subr.mxu0 0.0
    %457 = vmatpush1.msra.mxu0 0.0
    %458 = vmatprep.subr.mxu0 0.0
    %459 = vmatpush1.msra.mxu0 0.0
    %460 = vmatprep.subr.mxu0 0.0
    %461 = vmatpush1.msra.mxu0 0.0
    %462 = vmatprep.subr.mxu0 0.0
    %463 = vmatpush1.msra.mxu0 0.0
    %464 = vmatprep.subr.mxu0 0.0
    %465 = vmatpush1.msra.mxu0 0.0
    %466 = vmatprep.subr.mxu0 0.0
    %467 = vmatpush1.msra.mxu0 0.0
    %468 = vmatprep.subr.mxu0 0.0
    %469 = vmatpush1.msra.mxu0 0.0
    %470 = vmatprep.subr.mxu0 0.0
    %471 = vmatpush1.msra.mxu0 0.0
    %472 = vmatprep.subr.mxu0 0.0
    %473 = vmatpush1.msra.mxu0 0.0
    %474 = vmatprep.subr.mxu0 0.0
    %475 = vmatpush1.msra.mxu0 0.0
    %476 = vmatprep.subr.mxu0 0.0
    %477 = vmatpush1.msra.mxu0 0.0
    %478 = vmatprep.subr.mxu0 0.0
    %479 = vmatpush1.msra.mxu0 0.0
    %480 = vmatprep.subr.mxu0 %v443
    %481 = vmatpush1.msra.mxu0 %v442
    %482 = vmatprep.subr.mxu0 %v441
    %483 = vmatpush1.msra.mxu0 %v440
    %484 = vmatprep.subr.mxu0 %v439
    %485 = vmatpush1.msra.mxu0 %v438
    %486 = vmatprep.subr.mxu0 %v437
    %487 = vmatpush1.msra.mxu0 %v436
    %488 = vmatprep.subr.mxu0 0.0
    %489 = vmatpush2.msra.mxu0 0.0
    %490 = vmatprep.subr.mxu0 0.0
    %491 = vmatpush2.msra.mxu0 0.0
    %492 = vmatprep.subr.mxu0 0.0
    %493 = vmatpush2.msra.mxu0 0.0
    %494 = vmatprep.subr.mxu0 0.0
    %495 = vmatpush2.msra.mxu0 0.0
    %496 = vmatprep.subr.mxu0 0.0
    %497 = vmatpush2.msra.mxu0 0.0
    %498 = vmatprep.subr.mxu0 0.0
    %499 = vmatpush2.msra.mxu0 0.0
    %500 = vmatprep.subr.mxu0 0.0
    %501 = vmatpush2.msra.mxu0 0.0
    %502 = vmatprep.subr.mxu0 0.0
    %503 = vmatpush2.msra.mxu0 0.0
    %504 = vmatprep.subr.mxu0 0.0
    %505 = vmatpush2.msra.mxu0 0.0
    %506 = vmatprep.subr.mxu0 0.0
    %507 = vmatpush2.msra.mxu0 0.0
    %508 = vmatprep.subr.mxu0 0.0
    %509 = vmatpush2.msra.mxu0 0.0
    %510 = vmatprep.subr.mxu0 0.0
    %511 = vmatpush2.msra.mxu0 0.0
    %512 = vmatprep.subr.mxu0 0.0
    %513 = vmatpush2.msra.mxu0 0.0
    %514 = vmatprep.subr.mxu0 0.0
    %515 = vmatpush2.msra.mxu0 0.0
    %516 = vmatprep.subr.mxu0 0.0
    %517 = vmatpush2.msra.mxu0 0.0
    %518 = vmatprep.subr.mxu0 0.0
    %519 = vmatpush2.msra.mxu0 0.0
    %520 = vmatprep.mubr.f32.mxu0 0.0
    %521 = vmatmul.mubr.f32.gmra.mxu0 %v454
    %v522 = vpop.f32.mrf.mxu0
    %v523 = vadd.f32 %v447, %v522
    %v524 = vpop.f32.mrf.mxu0
    %v525 = vadd.f32 %v451, %v524
    %526 = vdwg.mxu0
    %v527 = vmax.f32 %v525, 0.0
    %vm528 = vcmp.ne.f32.partialorder %v525, %v525
    %v529 = vadd.f32 %v525, 0.0
    %v530 = vand.u32 2147483647, %v525
    %v531 = vsub.f32 0.0, %v530
    %v532 = vmul.f32 %v531, 1.442695
    %v533 = vpow.pop %v532
    %v534 = vadd.f32 %v533, 1.0
    %v535 = vlog2.pop %v534
    %v536 = vmul.f32 %v535, 0.6931472
    %v537 = vmul.f32 -0.5, %v533
    %v538 = vadd.f32 %v537, 1.0
    %v539 = vmul.f32 %v538, %v533
    %v540 = vand.u32 2147483647, %v533
    %vm541 = vcmp.lt.f32.partialorder %v540, 0.0004427343
    %v542 = vsel %vm541, %v539, %v536
    %v543 = vadd.f32 %v527, %v542
    %v544 = vsel %vm528, %v529, %v543
    %v545 = vrsqrt.pop %v544
    %v546 = vmul.f32 %v544, %v545
    %vm547 = vcmp.eq.f32.partialorder %v544, inf
    %v548 = vsel %vm547, %v544, %v546
    %vm549 = vcmp.eq.f32.partialorder %v544, 0.0
    %v550 = vand.u32 %v544, 2147483648
    %v551 = vsel %vm549, %v550, %v548
    %v552 = vadd.f32 %v434, %v551
    %s553 = scalar_lea.vmem [#allocation8], 128
    %v554 = vld [vmem:[%s553] sm:$0xff]
    %v555 = vld [vmem:[%s553 + $0x8] sm:$0xff]
    %v556 = vld [vmem:[%s553 + $0x10] sm:$0xff]
    %v557 = vld [vmem:[%s553 + $0x18] sm:$0xff]
    %v558 = vld [vmem:[%s553 + $0x20] sm:$0xff]
    %v559 = vld [vmem:[%s553 + $0x28] sm:$0xff]
    %v560 = vld [vmem:[%s553 + $0x30] sm:$0xff]
    %v561 = vld [vmem:[%s553 + $0x38] sm:$0xff]
    %v562 = vlaneseq
    %v563 = vshrl.u32 %v562, 7
    %v564 = vsub.s32 2, %v563
    %v565 = vrot.slane %v317, %v564
    %v566 = vlaneseq
    %v567 = vshrl.u32 %v566, 7
    %v568 = vsub.s32 2, %v567
    %v569 = vrot.slane %v318, %v568
    %570 = vrot.lane.b32.xlu0 %v315, 64
    %v571 = vpop.permute.xlu0 %570
    %v572 = vsel %vm240, %v571, 0
    %574 = vmatprep.subr.mxu0 0.0
    %575 = vmatpush1.msra.mxu0 0.0
    %576 = vmatprep.subr.mxu0 0.0
    %577 = vmatpush1.msra.mxu0 0.0
    %578 = vmatprep.subr.mxu0 0.0
    %579 = vmatpush1.msra.mxu0 0.0
    %580 = vmatprep.subr.mxu0 0.0
    %581 = vmatpush1.msra.mxu0 0.0
    %582 = vmatprep.subr.mxu0 0.0
    %583 = vmatpush1.msra.mxu0 0.0
    %584 = vmatprep.subr.mxu0 0.0
    %585 = vmatpush1.msra.mxu0 0.0
    %586 = vmatprep.subr.mxu0 0.0
    %587 = vmatpush1.msra.mxu0 0.0
    %588 = vmatprep.subr.mxu0 0.0
    %589 = vmatpush1.msra.mxu0 0.0
    %590 = vmatprep.subr.mxu0 0.0
    %591 = vmatpush1.msra.mxu0 0.0
    %592 = vmatprep.subr.mxu0 0.0
    %593 = vmatpush1.msra.mxu0 0.0
    %594 = vmatprep.subr.mxu0 0.0
    %595 = vmatpush1.msra.mxu0 0.0
    %596 = vmatprep.subr.mxu0 0.0
    %597 = vmatpush1.msra.mxu0 0.0
    %598 = vmatprep.subr.mxu0 %v561
    %599 = vmatpush1.msra.mxu0 %v560
    %600 = vmatprep.subr.mxu0 %v559
    %601 = vmatpush1.msra.mxu0 %v558
    %602 = vmatprep.subr.mxu0 %v557
    %603 = vmatpush1.msra.mxu0 %v556
    %604 = vmatprep.subr.mxu0 %v555
    %605 = vmatpush1.msra.mxu0 %v554
    %606 = vmatprep.subr.mxu0 0.0
    %607 = vmatpush2.msra.mxu0 0.0
    %608 = vmatprep.subr.mxu0 0.0
    %609 = vmatpush2.msra.mxu0 0.0
    %610 = vmatprep.subr.mxu0 0.0
    %611 = vmatpush2.msra.mxu0 0.0
    %612 = vmatprep.subr.mxu0 0.0
    %613 = vmatpush2.msra.mxu0 0.0
    %614 = vmatprep.subr.mxu0 0.0
    %615 = vmatpush2.msra.mxu0 0.0
    %616 = vmatprep.subr.mxu0 0.0
    %617 = vmatpush2.msra.mxu0 0.0
    %618 = vmatprep.subr.mxu0 0.0
    %619 = vmatpush2.msra.mxu0 0.0
    %620 = vmatprep.subr.mxu0 0.0
    %621 = vmatpush2.msra.mxu0 0.0
    %622 = vmatprep.subr.mxu0 0.0
    %623 = vmatpush2.msra.mxu0 0.0
    %624 = vmatprep.subr.mxu0 0.0
    %625 = vmatpush2.msra.mxu0 0.0
    %626 = vmatprep.subr.mxu0 0.0
    %627 = vmatpush2.msra.mxu0 0.0
    %628 = vmatprep.subr.mxu0 0.0
    %629 = vmatpush2.msra.mxu0 0.0
    %630 = vmatprep.subr.mxu0 0.0
    %631 = vmatpush2.msra.mxu0 0.0
    %632 = vmatprep.subr.mxu0 0.0
    %633 = vmatpush2.msra.mxu0 0.0
    %634 = vmatprep.subr.mxu0 0.0
    %635 = vmatpush2.msra.mxu0 0.0
    %636 = vmatprep.subr.mxu0 0.0
    %637 = vmatpush2.msra.mxu0 0.0
    %638 = vmatprep.mubr.f32.mxu0 0.0
    %639 = vmatmul.mubr.f32.gmra.mxu0 %v572
    %v640 = vpop.f32.mrf.mxu0
    %v641 = vadd.f32 %v565, %v640
    %v642 = vpop.f32.mrf.mxu0
    %v643 = vadd.f32 %v569, %v642
    %644 = vdwg.mxu0
    %v645 = vmax.f32 %v643, 0.0
    %vm646 = vcmp.ne.f32.partialorder %v643, %v643
    %v647 = vadd.f32 %v643, 0.0
    %v648 = vand.u32 2147483647, %v643
    %v649 = vsub.f32 0.0, %v648
    %v650 = vmul.f32 %v649, 1.442695
    %v651 = vpow.pop %v650
    %v652 = vadd.f32 %v651, 1.0
    %v653 = vlog2.pop %v652
    %v654 = vmul.f32 %v653, 0.6931472
    %v655 = vmul.f32 -0.5, %v651
    %v656 = vadd.f32 %v655, 1.0
    %v657 = vmul.f32 %v656, %v651
    %v658 = vand.u32 2147483647, %v651
    %vm659 = vcmp.lt.f32.partialorder %v658, 0.0004427343
    %v660 = vsel %vm659, %v657, %v654
    %v661 = vadd.f32 %v645, %v660
    %v662 = vsel %vm646, %v647, %v661
    %v663 = vrsqrt.pop %v662
    %v664 = vmul.f32 %v662, %v663
    %vm665 = vcmp.eq.f32.partialorder %v662, inf
    %v666 = vsel %vm665, %v662, %v664
    %vm667 = vcmp.eq.f32.partialorder %v662, 0.0
    %v668 = vand.u32 %v662, 2147483648
    %v669 = vsel %vm667, %v668, %v666
    %v670 = vadd.f32 %v552, %v669
    %s671 = scalar_lea.vmem [#allocation8], 192
    %v672 = vld [vmem:[%s671] sm:$0xff]
    %v673 = vld [vmem:[%s671 + $0x8] sm:$0xff]
    %v674 = vld [vmem:[%s671 + $0x10] sm:$0xff]
    %v675 = vld [vmem:[%s671 + $0x18] sm:$0xff]
    %v676 = vld [vmem:[%s671 + $0x20] sm:$0xff]
    %v677 = vld [vmem:[%s671 + $0x28] sm:$0xff]
    %v678 = vld [vmem:[%s671 + $0x30] sm:$0xff]
    %v679 = vld [vmem:[%s671 + $0x38] sm:$0xff]
    %v680 = vlaneseq
    %v681 = vshrl.u32 %v680, 7
    %v682 = vsub.s32 3, %v681
    %v683 = vrot.slane %v317, %v682
    %v684 = vlaneseq
    %v685 = vshrl.u32 %v684, 7
    %v686 = vsub.s32 3, %v685
    %v687 = vrot.slane %v318, %v686
    %688 = vrot.lane.b32.xlu0 %v315, 32
    %v689 = vpop.permute.xlu0 %688
    %v690 = vsel %vm240, %v689, 0
    %692 = vmatprep.subr.mxu0 0.0
    %693 = vmatpush1.msra.mxu0 0.0
    %694 = vmatprep.subr.mxu0 0.0
    %695 = vmatpush1.msra.mxu0 0.0
    %696 = vmatprep.subr.mxu0 0.0
    %697 = vmatpush1.msra.mxu0 0.0
    %698 = vmatprep.subr.mxu0 0.0
    %699 = vmatpush1.msra.mxu0 0.0
    %700 = vmatprep.subr.mxu0 0.0
    %701 = vmatpush1.msra.mxu0 0.0
    %702 = vmatprep.subr.mxu0 0.0
    %703 = vmatpush1.msra.mxu0 0.0
    %704 = vmatprep.subr.mxu0 0.0
    %705 = vmatpush1.msra.mxu0 0.0
    %706 = vmatprep.subr.mxu0 0.0
    %707 = vmatpush1.msra.mxu0 0.0
    %708 = vmatprep.subr.mxu0 0.0
    %709 = vmatpush1.msra.mxu0 0.0
    %710 = vmatprep.subr.mxu0 0.0
    %711 = vmatpush1.msra.mxu0 0.0
    %712 = vmatprep.subr.mxu0 0.0
    %713 = vmatpush1.msra.mxu0 0.0
    %714 = vmatprep.subr.mxu0 0.0
    %715 = vmatpush1.msra.mxu0 0.0
    %716 = vmatprep.subr.mxu0 %v679
    %717 = vmatpush1.msra.mxu0 %v678
    %718 = vmatprep.subr.mxu0 %v677
    %719 = vmatpush1.msra.mxu0 %v676
    %720 = vmatprep.subr.mxu0 %v675
    %721 = vmatpush1.msra.mxu0 %v674
    %722 = vmatprep.subr.mxu0 %v673
    %723 = vmatpush1.msra.mxu0 %v672
    %724 = vmatprep.subr.mxu0 0.0
    %725 = vmatpush2.msra.mxu0 0.0
    %726 = vmatprep.subr.mxu0 0.0
    %727 = vmatpush2.msra.mxu0 0.0
    %728 = vmatprep.subr.mxu0 0.0
    %729 = vmatpush2.msra.mxu0 0.0
    %730 = vmatprep.subr.mxu0 0.0
    %731 = vmatpush2.msra.mxu0 0.0
    %732 = vmatprep.subr.mxu0 0.0
    %733 = vmatpush2.msra.mxu0 0.0
    %734 = vmatprep.subr.mxu0 0.0
    %735 = vmatpush2.msra.mxu0 0.0
    %736 = vmatprep.subr.mxu0 0.0
    %737 = vmatpush2.msra.mxu0 0.0
    %738 = vmatprep.subr.mxu0 0.0
    %739 = vmatpush2.msra.mxu0 0.0
    %740 = vmatprep.subr.mxu0 0.0
    %741 = vmatpush2.msra.mxu0 0.0
    %742 = vmatprep.subr.mxu0 0.0
    %743 = vmatpush2.msra.mxu0 0.0
    %744 = vmatprep.subr.mxu0 0.0
    %745 = vmatpush2.msra.mxu0 0.0
    %746 = vmatprep.subr.mxu0 0.0
    %747 = vmatpush2.msra.mxu0 0.0
    %748 = vmatprep.subr.mxu0 0.0
    %749 = vmatpush2.msra.mxu0 0.0
    %750 = vmatprep.subr.mxu0 0.0
    %751 = vmatpush2.msra.mxu0 0.0
    %752 = vmatprep.subr.mxu0 0.0
    %753 = vmatpush2.msra.mxu0 0.0
    %754 = vmatprep.subr.mxu0 0.0
    %755 = vmatpush2.msra.mxu0 0.0
    %756 = vmatprep.mubr.f32.mxu0 0.0
    %757 = vmatmul.mubr.f32.gmra.mxu0 %v690
    %v758 = vpop.f32.mrf.mxu0
    %v759 = vadd.f32 %v683, %v758
    %v760 = vpop.f32.mrf.mxu0
    %v761 = vadd.f32 %v687, %v760
    %762 = vdwg.mxu0
    %v763 = vmax.f32 %v761, 0.0
    %vm764 = vcmp.ne.f32.partialorder %v761, %v761
    %v765 = vadd.f32 %v761, 0.0
    %v766 = vand.u32 2147483647, %v761
    %v767 = vsub.f32 0.0, %v766
    %v768 = vmul.f32 %v767, 1.442695
    %v769 = vpow.pop %v768
    %v770 = vadd.f32 %v769, 1.0
    %v771 = vlog2.pop %v770
    %v772 = vmul.f32 %v771, 0.6931472
    %v773 = vmul.f32 -0.5, %v769
    %v774 = vadd.f32 %v773, 1.0
    %v775 = vmul.f32 %v774, %v769
    %v776 = vand.u32 2147483647, %v769
    %vm777 = vcmp.lt.f32.partialorder %v776, 0.0004427343
    %v778 = vsel %vm777, %v775, %v772
    %v779 = vadd.f32 %v763, %v778
    %v780 = vsel %vm764, %v765, %v779
    %v781 = vrsqrt.pop %v780
    %v782 = vmul.f32 %v780, %v781
    %vm783 = vcmp.eq.f32.partialorder %v780, inf
    %v784 = vsel %vm783, %v780, %v782
    %vm785 = vcmp.eq.f32.partialorder %v780, 0.0
    %v786 = vand.u32 %v780, 2147483648
    %v787 = vsel %vm785, %v786, %v784
    %v788 = vadd.f32 %v670, %v787
    %s789 = scalar_lea.vmem [#allocation8], 256
    %v790 = vld [vmem:[%s789] sm:$0xff]
    %v791 = vld [vmem:[%s789 + $0x8] sm:$0xff]
    %v792 = vld [vmem:[%s789 + $0x10] sm:$0xff]
    %v793 = vld [vmem:[%s789 + $0x18] sm:$0xff]
    %v794 = vld [vmem:[%s789 + $0x20] sm:$0xff]
    %v795 = vld [vmem:[%s789 + $0x28] sm:$0xff]
    %v796 = vld [vmem:[%s789 + $0x30] sm:$0xff]
    %v797 = vld [vmem:[%s789 + $0x38] sm:$0xff]
    %v798 = vlaneseq
    %v799 = vshrl.u32 %v798, 7
    %v800 = vsub.s32 4, %v799
    %v801 = vrot.slane %v317, %v800
    %v802 = vlaneseq
    %v803 = vshrl.u32 %v802, 7
    %v804 = vsub.s32 4, %v803
    %v805 = vrot.slane %v318, %v804
    %v807 = vsel %vm240, %v316, 0
    %809 = vmatprep.subr.mxu0 0.0
    %810 = vmatpush1.msra.mxu0 0.0
    %811 = vmatprep.subr.mxu0 0.0
    %812 = vmatpush1.msra.mxu0 0.0
    %813 = vmatprep.subr.mxu0 0.0
    %814 = vmatpush1.msra.mxu0 0.0
    %815 = vmatprep.subr.mxu0 0.0
    %816 = vmatpush1.msra.mxu0 0.0
    %817 = vmatprep.subr.mxu0 0.0
    %818 = vmatpush1.msra.mxu0 0.0
    %819 = vmatprep.subr.mxu0 0.0
    %820 = vmatpush1.msra.mxu0 0.0
    %821 = vmatprep.subr.mxu0 0.0
    %822 = vmatpush1.msra.mxu0 0.0
    %823 = vmatprep.subr.mxu0 0.0
    %824 = vmatpush1.msra.mxu0 0.0
    %825 = vmatprep.subr.mxu0 0.0
    %826 = vmatpush1.msra.mxu0 0.0
    %827 = vmatprep.subr.mxu0 0.0
    %828 = vmatpush1.msra.mxu0 0.0
    %829 = vmatprep.subr.mxu0 0.0
    %830 = vmatpush1.msra.mxu0 0.0
    %831 = vmatprep.subr.mxu0 0.0
    %832 = vmatpush1.msra.mxu0 0.0
    %833 = vmatprep.subr.mxu0 %v797
    %834 = vmatpush1.msra.mxu0 %v796
    %835 = vmatprep.subr.mxu0 %v795
    %836 = vmatpush1.msra.mxu0 %v794
    %837 = vmatprep.subr.mxu0 %v793
    %838 = vmatpush1.msra.mxu0 %v792
    %839 = vmatprep.subr.mxu0 %v791
    %840 = vmatpush1.msra.mxu0 %v790
    %841 = vmatprep.subr.mxu0 0.0
    %842 = vmatpush2.msra.mxu0 0.0
    %843 = vmatprep.subr.mxu0 0.0
    %844 = vmatpush2.msra.mxu0 0.0
    %845 = vmatprep.subr.mxu0 0.0
    %846 = vmatpush2.msra.mxu0 0.0
    %847 = vmatprep.subr.mxu0 0.0
    %848 = vmatpush2.msra.mxu0 0.0
    %849 = vmatprep.subr.mxu0 0.0
    %850 = vmatpush2.msra.mxu0 0.0
    %851 = vmatprep.subr.mxu0 0.0
    %852 = vmatpush2.msra.mxu0 0.0
    %853 = vmatprep.subr.mxu0 0.0
    %854 = vmatpush2.msra.mxu0 0.0
    %855 = vmatprep.subr.mxu0 0.0
    %856 = vmatpush2.msra.mxu0 0.0
    %857 = vmatprep.subr.mxu0 0.0
    %858 = vmatpush2.msra.mxu0 0.0
    %859 = vmatprep.subr.mxu0 0.0
    %860 = vmatpush2.msra.mxu0 0.0
    %861 = vmatprep.subr.mxu0 0.0
    %862 = vmatpush2.msra.mxu0 0.0
    %863 = vmatprep.subr.mxu0 0.0
    %864 = vmatpush2.msra.mxu0 0.0
    %865 = vmatprep.subr.mxu0 0.0
    %866 = vmatpush2.msra.mxu0 0.0
    %867 = vmatprep.subr.mxu0 0.0
    %868 = vmatpush2.msra.mxu0 0.0
    %869 = vmatprep.subr.mxu0 0.0
    %870 = vmatpush2.msra.mxu0 0.0
    %871 = vmatprep.subr.mxu0 0.0
    %872 = vmatpush2.msra.mxu0 0.0
    %873 = vmatprep.mubr.f32.mxu0 0.0
    %874 = vmatmul.mubr.f32.gmra.mxu0 %v807
    %v875 = vpop.f32.mrf.mxu0
    %v876 = vadd.f32 %v801, %v875
    %v877 = vpop.f32.mrf.mxu0
    %v878 = vadd.f32 %v805, %v877
    %879 = vdwg.mxu0
    %v880 = vmax.f32 %v878, 0.0
    %vm881 = vcmp.ne.f32.partialorder %v878, %v878
    %v882 = vadd.f32 %v878, 0.0
    %v883 = vand.u32 2147483647, %v878
    %v884 = vsub.f32 0.0, %v883
    %v885 = vmul.f32 %v884, 1.442695
    %v886 = vpow.pop %v885
    %v887 = vadd.f32 %v886, 1.0
    %v888 = vlog2.pop %v887
    %v889 = vmul.f32 %v888, 0.6931472
    %v890 = vmul.f32 -0.5, %v886
    %v891 = vadd.f32 %v890, 1.0
    %v892 = vmul.f32 %v891, %v886
    %v893 = vand.u32 2147483647, %v886
    %vm894 = vcmp.lt.f32.partialorder %v893, 0.0004427343
    %v895 = vsel %vm894, %v892, %v889
    %v896 = vadd.f32 %v880, %v895
    %v897 = vsel %vm881, %v882, %v896
    %v898 = vrsqrt.pop %v897
    %v899 = vmul.f32 %v897, %v898
    %vm900 = vcmp.eq.f32.partialorder %v897, inf
    %v901 = vsel %vm900, %v897, %v899
    %vm902 = vcmp.eq.f32.partialorder %v897, 0.0
    %v903 = vand.u32 %v897, 2147483648
    %v904 = vsel %vm902, %v903, %v901
    %v905 = vadd.f32 %v788, %v904
    %v906 = vadd.f32 %v405, 0.0
    %v907 = vadd.f32 %v906, %v523
    %v908 = vadd.f32 %v907, %v641
    %v909 = vadd.f32 %v908, %v759
    %v910 = vadd.f32 %v909, %v876
    %v911 = vrcp.pop 5.0
    %v912 = vmul.f32 %v910, %v911
    %v913 = vsub.f32 %v405, %v912
    %v914 = vmul.f32 %v913, %v913
    %v915 = vadd.f32 %v914, 0.0
    %v916 = vsub.f32 %v523, %v912
    %v917 = vmul.f32 %v916, %v916
    %v918 = vadd.f32 %v915, %v917
    %v919 = vsub.f32 %v641, %v912
    %v920 = vmul.f32 %v919, %v919
    %v921 = vadd.f32 %v918, %v920
    %v922 = vsub.f32 %v759, %v912
    %v923 = vmul.f32 %v922, %v922
    %v924 = vadd.f32 %v921, %v923
    %v925 = vsub.f32 %v876, %v912
    %v926 = vmul.f32 %v925, %v925
    %v927 = vadd.f32 %v924, %v926
    %v928 = vrcp.pop 4.0
    %v929 = vmul.f32 %v927, %v928
    %930 = vst [vmem:[#allocation11] sm:$0xff] %v912
    %v931 = vrsqrt.pop %v929
    %v932 = vmul.f32 %v929, %v931
    %vm933 = vcmp.eq.f32.partialorder %v929, inf
    %v934 = vsel %vm933, %v929, %v932
    %vm935 = vcmp.eq.f32.partialorder %v929, 0.0
    %v936 = vand.u32 %v929, 2147483648
    %v937 = vsel %vm935, %v936, %v934
    %v938 = vmul.f32 %v905, %v911
    %v939 = vadd.f32 %v937, %v938
    %940 = vst [vmem:[#allocation12] sm:$0xff] %v939
    // Predicated region
    $region50: #{tpu_custom_call.1} parent=1 // pred_check
      _
    $region51: #{tpu_custom_call.1} parent=1 // pred_check_branch
      %942 = sbr.rel (0) target = $region53
    $region52: #{tpu_custom_call.1} parent=1 // pred_region
      %s944 = ssub.s32 128, 128
      %945 = vsyncadd [#allocation4], %s944
      %s947 = sshll.u32 [#allocation11], 4
      %s948 = int_to_ptr.vmem [resolvable:$true] %s947
      %950 = dma.vmem_to_hbm [thread:$0]  %s948, 128, %s7, [#allocation4]
    $region53: #{tpu_custom_call.1} parent=1 // pred_fallthru
      _
    // Predicated region
    $region54: #{tpu_custom_call.1} parent=1 // pred_check
      _
    $region55: #{tpu_custom_call.1} parent=1 // pred_check_branch
      %952 = sbr.rel (0) target = $region57
    $region56: #{tpu_custom_call.1} parent=1 // pred_region
      %s954 = ssub.s32 128, 128
      %955 = vsyncadd [#allocation13], %s954
      %s957 = sshll.u32 [#allocation12], 4
      %s958 = int_to_ptr.vmem [resolvable:$true] %s957
      %960 = dma.vmem_to_hbm [thread:$0]  %s958, 128, %s8, [#allocation13]
    $region57: #{tpu_custom_call.1} parent=1 // pred_fallthru
      _
    // Predicated region
    $region58: #{tpu_custom_call.1} parent=1 // pred_check
      _
    $region59: #{tpu_custom_call.1} parent=1 // pred_check_branch
      %962 = sbr.rel (0) target = $region61
    $region60: #{tpu_custom_call.1} parent=1 // pred_region
      %963 = dma.done [#allocation4], 128
    $region61: #{tpu_custom_call.1} parent=1 // pred_fallthru
      _
    // Predicated region
    $region62: #{tpu_custom_call.1} parent=1 // pred_check
      _
    $region63: #{tpu_custom_call.1} parent=1 // pred_check_branch
      %965 = sbr.rel (0) target = $region65
    $region64: #{tpu_custom_call.1} parent=1 // pred_region
      %966 = dma.done [#allocation13], 128
    $region65: #{tpu_custom_call.1} parent=1 // pred_fallthru
      _
    %967 = vsyncpa [#allocation3], 1
    %968 = vsyncpa [#allocation6], 1
    %969 = vsyncpa [#allocation9], 1
    %970 = vsyncpa [#allocation4], 1
    %971 = vsyncpa [#allocation13], 1

</llo_original>
